<compile_context>
chip_gen: v7x
topology: tpu7x:2x2x1
jax: 0.10.0
libtpu: 0.0.40
codegen_flags: <defaults>
</compile_context>

<pallas_src>
import jax
import jax.numpy as jnp
from jax.experimental import pallas as pl
from jax.experimental.pallas import tpu as pltpu


def _add_pos_emb_kernel(x_ref, pos_ref, o_ref):
    # x_ref/o_ref: (TB, TL) tile; pos_ref: (1, TL) block (sublane-broadcast add).
    o_ref[...] = (x_ref[...] + pos_ref[...]).astype(o_ref.dtype)


def _per_chip_block_budget():
    """Max bytes per x/out block, by TPU generation (conservative fallback)."""
    kind = ""
    try:
        kind = jax.devices()[0].device_kind.lower()
    except Exception:
        pass
    if "v7" in kind or "7x" in kind:
        return 7 * 1024 * 1024    # v7x: fast HBM -> bigger blocks pay off
    if "v6" in kind:
        return 5 * 1024 * 1024    # v6e: 4x5 MiB double-buffered fits 32 MiB scoped VMEM
    return 2 * 1024 * 1024        # v5e / v5p / v4 / unknown: fits 16 MiB scoped VMEM


def _fold_factor(nc, rows, target=128):
    """Smallest k dividing `rows` such that k*nc >= target (lane density guard)."""
    if nc >= target or rows <= 1:
        return 1
    k_min = -(-target // nc)  # ceil(target / nc)
    for k in range(k_min, min(rows, k_min * 64) + 1):
        if rows % k == 0:
            return k
    if rows * nc <= 4096:     # tiny array: fold everything into one row
        return rows
    return 1                  # give up; accept masked stores rather than odd shapes


def _choose_tiles(rows, nc, itemsize, budget):
    """Pick (row_tile, lane_tile) that is layout-legal and within the VMEM budget."""
    sublane = 8 * (4 // max(itemsize, 1))   # f32 -> 8, bf16 -> 16, 8-bit -> 32
    row_bytes = nc * itemsize
    # Whole array fits in one block.
    if rows * row_bytes <= budget:
        return rows, nc
    # Full-width row blocks fit at >= one sublane group: tile rows only.
    if sublane * row_bytes <= budget:
        tb = (budget // row_bytes) // sublane * sublane
        return max(tb, sublane), nc
    # Rows too wide for the budget: also tile the lane axis in 128-lane multiples.
    tb = min(rows, sublane)
    tl = max(128, (budget // (tb * itemsize)) // 128 * 128)
    return tb, min(tl, nc)


def add_pos_emb(x, pos_emb, num_vecs, *, block_rows=None, max_block_bytes=None,
                donate_x=False):
    """x: (B, N, C); pos_emb: (..., num_vecs, C) (module stores (1, 1, num_vecs, C))."""
    b, n, c = x.shape
    assert n % num_vecs == 0, "N must be a multiple of num_vecs"
    g = n // num_vecs
    nc = num_vecs * c
    # Validate the pos layout, not just the element count.
    assert pos_emb.shape[-2:] == (num_vecs, c), (
        f"pos_emb trailing dims must be ({num_vecs}, {c}), got {pos_emb.shape}")
    assert pos_emb.size == nc

    budget = max_block_bytes if max_block_bytes is not None else _per_chip_block_budget()
    itemsize = jnp.dtype(x.dtype).itemsize
    rows = b * g

    # Lane-density guard: fold k consecutive group-rows into the lane axis if nc < 128.
    k = _fold_factor(nc, rows)
    rows_eff = rows // k
    nc_eff = nc * k

    x_r = x.reshape(rows_eff, nc_eff)                       # lane-dense 2D view
    pos_row = pos_emb.reshape(1, nc).astype(x.dtype)        # pre-cast: no in-kernel promote
    pos2d = jnp.tile(pos_row, (1, k)) if k > 1 else pos_row

    if block_rows is not None:
        tb, tl = int(block_rows), nc_eff
    else:
        tb, tl = _choose_tiles(rows_eff, nc_eff, itemsize, budget)

    if tl == nc_eff:
        grid = (pl.cdiv(rows_eff, tb),)
        in_specs = [
            pl.BlockSpec((tb, nc_eff), lambda i: (i, 0)),   # x tile: TB rows, full lane width
            pl.BlockSpec((1, nc_eff), lambda i: (0, 0)),    # pos: same block every step (resident)
        ]
        out_spec = pl.BlockSpec((tb, nc_eff), lambda i: (i, 0))
        dims = ("parallel",)
    else:
        # Very wide rows: tile the lane axis too; keep the row axis outer.
        grid = (pl.cdiv(rows_eff, tb), pl.cdiv(nc_eff, tl))
        in_specs = [
            pl.BlockSpec((tb, tl), lambda i, j: (i, j)),
            pl.BlockSpec((1, tl), lambda i, j: (0, j)),
        ]
        out_spec = pl.BlockSpec((tb, tl), lambda i, j: (i, j))
        dims = ("parallel", "arbitrary")

    # Cover double-buffered in+out blocks, the pos block, and slack.
    block_bytes = tb * tl * itemsize
    needed = 4 * block_bytes + 2 * tl * itemsize + (1 << 20)
    vmem_limit = max(needed, 32 * 1024 * 1024)              # >= every chip's scoped default

    call_kwargs = {}
    if donate_x:
        # Alias x into the output: no extra HBM allocation when the caller donates x.
        call_kwargs["input_output_aliases"] = {0: 0}

    out = pl.pallas_call(
        _add_pos_emb_kernel,
        out_shape=jax.ShapeDtypeStruct((rows_eff, nc_eff), x.dtype),
        grid_spec=pltpu.PrefetchScalarGridSpec(
            num_scalar_prefetch=0,
            grid=grid,
            in_specs=in_specs,
            out_specs=out_spec,
        ),
        compiler_params=pltpu.CompilerParams(
            dimension_semantics=dims,
            vmem_limit_bytes=vmem_limit,
        ),
        **call_kwargs,
    )(x_r, pos2d)

    return out.reshape(b, n, c)


def _reference(x, pos_emb, num_vecs):
    b, n, c = x.shape
    return (x.reshape(b, -1, num_vecs, c)
            + pos_emb.reshape(1, 1, num_vecs, c)).reshape(b, n, c)


if __name__ == "__main__":
    key = jax.random.PRNGKey(0)
    kx, kp = jax.random.split(key)

    # Test 1: module-like shapes (AddPosEmb(n=8, c=32), seq N=16, batch 2).
    B, num_vecs, C, G = 2, 8, 32, 2
    N = G * num_vecs
    x = jax.random.normal(kx, (B, N, C), dtype=jnp.float32)
    pos = 0.02 * jax.random.normal(kp, (1, 1, num_vecs, C), dtype=jnp.float32)
    out = jax.block_until_ready(add_pos_emb(x, pos, num_vecs))
    assert out.shape == (B, N, C)
    assert jnp.allclose(out, _reference(x, pos, num_vecs), atol=1e-6), "mismatch (auto tile)"

    # Test 2: ragged multi-block row tiling (rows=10, TB=8).
    G2 = 5
    N2 = G2 * num_vecs
    x2 = jax.random.normal(kx, (B, N2, C), dtype=jnp.float32)
    out2 = jax.block_until_ready(add_pos_emb(x2, pos, num_vecs, block_rows=8))
    assert jnp.allclose(out2, _reference(x2, pos, num_vecs), atol=1e-6), "mismatch (ragged rows)"

    # Test 3: narrow num_vecs*C (< 128 lanes) exercises the lane-density fold path.
    nv3, C3, G3 = 4, 16, 4
    N3 = G3 * nv3
    x3 = jax.random.normal(kx, (B, N3, C3), dtype=jnp.float32)
    pos3 = 0.02 * jax.random.normal(kp, (1, 1, nv3, C3), dtype=jnp.float32)
    out3 = jax.block_until_ready(add_pos_emb(x3, pos3, nv3))
    assert jnp.allclose(out3, _reference(x3, pos3, nv3), atol=1e-6), "mismatch (lane fold)"

    # Test 4: force the 2-D (row x lane) tiling path with a tiny block budget.
    G4 = 8
    N4 = G4 * num_vecs
    x4 = jax.random.normal(kx, (B, N4, C), dtype=jnp.float32)
    out4 = jax.block_until_ready(add_pos_emb(x4, pos, num_vecs, max_block_bytes=8 * 128 * 4))
    assert jnp.allclose(out4, _reference(x4, pos, num_vecs), atol=1e-6), "mismatch (lane tiles)"

    # Test 5: bf16 input with f32 pos parameter (wrapper pre-casts; no in-kernel promote).
    x5 = x.astype(jnp.bfloat16)
    out5 = jax.block_until_ready(add_pos_emb(x5, pos, num_vecs))
    ref5 = _reference(x5, pos.astype(jnp.bfloat16), num_vecs)
    assert out5.dtype == jnp.bfloat16
    assert jnp.allclose(out5.astype(jnp.float32), ref5.astype(jnp.float32), atol=1e-2), \
        "mismatch (bf16)"

    print("KERNEL_OK")
</pallas_src>

<mosaic_0001>
module attributes {stable_mosaic.version = 11 : i64} {
  func.func @_add_pos_emb_kernel(%arg0: i32, %arg1: memref<4x256xf32, #tpu.memory_space<vmem>>, %arg2: memref<1x256xf32, #tpu.memory_space<vmem>>, %arg3: memref<4x256xf32, #tpu.memory_space<vmem>>) attributes {dimension_semantics = [#tpu.dimension_semantics<parallel>], iteration_bounds = array<i64: 1>, scalar_prefetch = 0 : i64, scratch_operands = 0 : i64, tpu.core_type = #tpu.core_type<tc>, window_params = [{transform_indices = @transform_0, window_bounds = array<i64: 4, 256>}, {pipeline_mode = #tpu.pipeline_mode<synchronous>, transform_indices = @transform_1, window_bounds = array<i64: 1, 256>}, {transform_indices = @transform_2, window_bounds = array<i64: 4, 256>}]} {
    %c0 = arith.constant 0 : index
    %c0_0 = arith.constant 0 : index
    %0 = vector.load %arg1[%c0, %c0_0] : memref<4x256xf32, #tpu.memory_space<vmem>>, vector<4x256xf32>
    %c0_1 = arith.constant 0 : index
    %c0_2 = arith.constant 0 : index
    %1 = vector.load %arg2[%c0_1, %c0_2] : memref<1x256xf32, #tpu.memory_space<vmem>>, vector<1x256xf32>
    %2 = vector.broadcast %1 : vector<1x256xf32> to vector<4x256xf32>
    %3 = arith.addf %0, %2 : vector<4x256xf32>
    %c0_3 = arith.constant 0 : index
    %c0_4 = arith.constant 0 : index
    %4 = vector.load %arg3[%c0_3, %c0_4] : memref<4x256xf32, #tpu.memory_space<vmem>>, vector<4x256xf32>
    tpu.vector_store %arg3[%c0_3, %c0_4], %3 {strides = array<i32>} : memref<4x256xf32, #tpu.memory_space<vmem>>, vector<4x256xf32>,
    return
  }
  func.func @transform_0(%arg0: i32) -> (i32, i32) {
    %c0_i32 = arith.constant 0 : i32
    %c0_i32_0 = arith.constant 0 : i32
    return %arg0, %c0_i32 : i32, i32
  }
  func.func @transform_1(%arg0: i32) -> (i32, i32) {
    %c0_i32 = arith.constant 0 : i32
    %c0_i32_0 = arith.constant 0 : i32
    %c0_i32_1 = arith.constant 0 : i32
    return %c0_i32, %c0_i32_0 : i32, i32
  }
  func.func @transform_2(%arg0: i32) -> (i32, i32) {
    %c0_i32 = arith.constant 0 : i32
    %c0_i32_0 = arith.constant 0 : i32
    return %arg0, %c0_i32 : i32, i32
  }
}

</mosaic_0001>

<llo_original>
// kernel: tpu_custom_call.1
$region0: #{tpu_custom_call.1}
  #allocation0 [shape = 'u32[]', space=smem, size = 0x4, offset = 0x4, fixed_abs, tag = 'smem constant byte address 0x4 - core index']
  #allocation1 [shape = 'u32[144,128]{1,0:T(1,128)}', space=vmem, size = 0x12000, scoped, tag = 'internal scratch']
  %s0 = inlined_call_operand.hbm [shape: f32[4,256], index: 0, kind: input, shape index: {}]
  %s1 = inlined_call_operand.vmem [shape: f32[1,256], index: 1, kind: input, shape index: {}]
  %s2 = inlined_call_operand.hbm [shape: f32[4,256], index: 2, kind: output, shape index: {}]
  %s3 = sld [smem:[#allocation0]]
  $region22: #{tpu_custom_call.1} parent=0
    _
  %s5 = ssub.s32 1, %s3
  %s6 = scalar_select 0, %s5, %s3
  $region1: #{tpu_custom_call.1} parent=0
    #allocation2 [shape = 'u8[4096]{0}', space=vmem, size = 0x1000, scoped, tag = 'input window, operand 0, single buffered']
    #allocation3 [shape = 's32[1]{0}', space=sflag, size = 0x4, scoped, tag = 'scoped memory for tpu_custom_call.1']
    #allocation4 [shape = 's32[1]{0}', space=sflag, size = 0x4, scoped, tag = 'scoped memory for tpu_custom_call.1']
    #allocation5 [shape = 'u8[4096]{0}', space=vmem, size = 0x1000, scoped, tag = 'output window, operand 0, single buffered']
    %7 = vsyncpa [#allocation3], 0
    %8 = vsyncpa [#allocation4], 0
    // Predicated region
    $region2: #{tpu_custom_call.1} parent=1 // pred_check
      _
    $region3: #{tpu_custom_call.1} parent=1 // pred_check_branch
      %10 = sbr.rel (0) target = $region5
    $region4: #{tpu_custom_call.1} parent=1 // pred_region
      %s12 = ssub.s32 128, 128
      %13 = vsyncadd [#allocation3], %s12
      %s15 = sshll.u32 [#allocation2], 4
      %s16 = int_to_ptr.vmem [resolvable:$true] %s15
      %18 = dma.hbm_to_vmem [thread:$0]  %s0, 128, %s16, [#allocation3]
    $region5: #{tpu_custom_call.1} parent=1 // pred_fallthru
      _
    // Predicated region
    $region6: #{tpu_custom_call.1} parent=1 // pred_check
      _
    $region7: #{tpu_custom_call.1} parent=1 // pred_check_branch
      %20 = sbr.rel (0) target = $region9
    $region8: #{tpu_custom_call.1} parent=1 // pred_region
      _
    $region9: #{tpu_custom_call.1} parent=1 // pred_fallthru
      _
    // Predicated region
    $region10: #{tpu_custom_call.1} parent=1 // pred_check
      _
    $region11: #{tpu_custom_call.1} parent=1 // pred_check_branch
      %22 = sbr.rel (0) target = $region13
    $region12: #{tpu_custom_call.1} parent=1 // pred_region
      %23 = dma.done [#allocation3], 128
    $region13: #{tpu_custom_call.1} parent=1 // pred_fallthru
      _
    %v24 = vld [vmem:[#allocation2] sm:$0xff]
    %v25 = vld [vmem:[%s1] sm:$0x3]
    %v27 = vlaneseq
    %v28 = vshrl.u32 %v27, 7
    %v29 = vsub.s32 0, %v28
    %v30 = vrot.slane %v25, %v29
    %v31 = vlaneseq
    %v32 = vshrl.u32 %v31, 7
    %v33 = vsub.s32 1, %v32
    %v34 = vrot.slane %v25, %v33
    %v35 = vcombine.low %v30, %v34
    %v37 = vadd.f32 %v24, %v35
    %38 = vst [vmem:[#allocation5] sm:$0xff] %v37
    // Predicated region
    $region14: #{tpu_custom_call.1} parent=1 // pred_check
      _
    $region15: #{tpu_custom_call.1} parent=1 // pred_check_branch
      %40 = sbr.rel (0) target = $region17
    $region16: #{tpu_custom_call.1} parent=1 // pred_region
      %s42 = ssub.s32 128, 128
      %43 = vsyncadd [#allocation4], %s42
      %s45 = sshll.u32 [#allocation5], 4
      %s46 = int_to_ptr.vmem [resolvable:$true] %s45
      %48 = dma.vmem_to_hbm [thread:$0]  %s46, 128, %s2, [#allocation4]
    $region17: #{tpu_custom_call.1} parent=1 // pred_fallthru
      _
    // Predicated region
    $region18: #{tpu_custom_call.1} parent=1 // pred_check
      _
    $region19: #{tpu_custom_call.1} parent=1 // pred_check_branch
      %50 = sbr.rel (0) target = $region21
    $region20: #{tpu_custom_call.1} parent=1 // pred_region
      %51 = dma.done [#allocation4], 128
    $region21: #{tpu_custom_call.1} parent=1 // pred_fallthru
      _
    %52 = vsyncpa [#allocation3], 1
    %53 = vsyncpa [#allocation4], 1

</llo_original>
